<compile_context>
chip_gen: v7x
topology: tpu7x:2x2x1
jax: 0.10.0
libtpu: 0.0.40
codegen_flags: <defaults>
</compile_context>

<pallas_src>
import jax
import jax.numpy as jnp
from jax import lax
from jax.experimental import pallas as pl
from jax.experimental.pallas import tpu as pltpu

IN_FEATURES = 35
OUT_FEATURES = 35

# Below this row count the whole problem is a handful of vregs; a grid adds
# only bookkeeping.  Above it, use a >=2-step "parallel" grid (v7x 2-TC split).
GRIDLESS_MAX_ROWS = 1024
# Max rows per grid block.  ~2 KiB/row double-buffered (lane-padded f32 in+out)
# -> ~8 MiB at 4096 rows: safe under every generation's default scoped VMEM.
TB_MAX = 4096


def _round_up(x, m):
    return ((x + m - 1) // m) * m


def _cost_estimate(batch, itemsize):
    return pl.CostEstimate(
        flops=2 * batch * IN_FEATURES * OUT_FEATURES,
        bytes_accessed=(batch * (IN_FEATURES + OUT_FEATURES)
                        + OUT_FEATURES * IN_FEATURES
                        + OUT_FEATURES) * itemsize,
        transcendentals=0,
    )


def linear_kernel(x_ref, w_ref, b_ref, o_ref):
    # x_ref: (tb, in), w_ref: (out, in) (PyTorch layout), b_ref: (1, out)
    x = x_ref[...]
    w = w_ref[...]
    # y[b, o] = sum_i x[b, i] * w[o, i]  == x @ W.T  (transpose folded into MXU)
    y = lax.dot_general(
        x, w,
        dimension_numbers=(((1,), (1,)), ((), ())),
        preferred_element_type=jnp.float32,
    )
    o_ref[...] = (y + b_ref[...]).astype(o_ref.dtype)


def net_forward(x, weight, bias):
    """x: (B, 35); weight: (35, 35) PyTorch (out, in) layout; bias: (35,) or (1, 35)."""
    B = x.shape[0]
    if bias.ndim == 1:
        bias = bias.reshape(1, OUT_FEATURES)
    itemsize = jnp.dtype(x.dtype).itemsize

    if B <= GRIDLESS_MAX_ROWS:
        # Tiny problem: no grid / pipeline overhead; everything resident in VMEM.
        return pl.pallas_call(
            linear_kernel,
            out_shape=jax.ShapeDtypeStruct((B, OUT_FEATURES), x.dtype),
            in_specs=[
                pl.BlockSpec(memory_space=pltpu.MemorySpace.VMEM),
                pl.BlockSpec(memory_space=pltpu.MemorySpace.VMEM),
                pl.BlockSpec(memory_space=pltpu.MemorySpace.VMEM),
            ],
            out_specs=pl.BlockSpec(memory_space=pltpu.MemorySpace.VMEM),
            cost_estimate=_cost_estimate(B, itemsize),
        )(x, weight, bias)

    # Larger batch: tile the batch axis.  Force at least 2 grid steps so v7x's
    # two TensorCores can split mid-size batches; cap the tile at TB_MAX so big
    # batches still amortize per-step overhead without blowing scoped VMEM.
    tb = min(TB_MAX, _round_up(pl.cdiv(B, 2), 8))
    grid = (pl.cdiv(B, tb),)
    return pl.pallas_call(
        linear_kernel,
        out_shape=jax.ShapeDtypeStruct((B, OUT_FEATURES), x.dtype),
        grid=grid,
        in_specs=[
            pl.BlockSpec((tb, IN_FEATURES), lambda b: (b, 0)),
            # Weight/bias: constant index_map -> stay resident across all steps.
            pl.BlockSpec((OUT_FEATURES, IN_FEATURES), lambda b: (0, 0)),
            pl.BlockSpec((1, OUT_FEATURES), lambda b: (0, 0)),
        ],
        out_specs=pl.BlockSpec((tb, OUT_FEATURES), lambda b: (b, 0)),
        compiler_params=pltpu.CompilerParams(
            dimension_semantics=("parallel",)),
        cost_estimate=_cost_estimate(B, itemsize),
    )(x, weight, bias)


if __name__ == "__main__":
    key = jax.random.PRNGKey(0)
    k_x, k_w, k_xl = jax.random.split(key, 3)

    # Deterministic init matching Net._initialize_weights:
    #   nn.init.normal_(weight, 0, 0.01); nn.init.constant_(bias, 0)
    weight = 0.01 * jax.random.normal(
        k_w, (OUT_FEATURES, IN_FEATURES), dtype=jnp.float32)   # (out, in), PyTorch layout
    bias = jnp.zeros((1, OUT_FEATURES), dtype=jnp.float32)     # kept 2-D once, at init

    # --- small-batch path (grid-less, whole problem resident in VMEM) ---
    batch = 8
    x = jax.random.normal(k_x, (batch, IN_FEATURES), dtype=jnp.float32)
    out = net_forward(x, weight, bias)
    jax.block_until_ready(out)
    ref = x @ weight.T + bias
    assert out.shape == (batch, OUT_FEATURES)
    assert jnp.allclose(out, ref, atol=1e-4, rtol=1e-4)

    # --- larger-batch path (>=2-step batch-tiled "parallel" grid) ---
    big_batch = 2048
    x_big = jax.random.normal(k_xl, (big_batch, IN_FEATURES), dtype=jnp.float32)
    out_big = net_forward(x_big, weight, bias)
    jax.block_until_ready(out_big)
    ref_big = x_big @ weight.T + bias
    assert out_big.shape == (big_batch, OUT_FEATURES)
    assert jnp.allclose(out_big, ref_big, atol=1e-4, rtol=1e-4)

    print("KERNEL_OK")
</pallas_src>

<mosaic_0001>
module attributes {stable_mosaic.version = 11 : i64} {
  func.func @linear_kernel(%arg0: memref<8x35xf32, #tpu.memory_space<vmem>>, %arg1: memref<35x35xf32, #tpu.memory_space<vmem>>, %arg2: memref<1x35xf32, #tpu.memory_space<vmem>>, %arg3: memref<8x35xf32, #tpu.memory_space<vmem>>) attributes {dimension_semantics = [], scalar_prefetch = 0 : i64, scratch_operands = 0 : i64, tpu.core_type = #tpu.core_type<tc>} {
    %c0 = arith.constant 0 : index
    %c0_0 = arith.constant 0 : index
    %0 = vector.load %arg0[%c0, %c0_0] : memref<8x35xf32, #tpu.memory_space<vmem>>, vector<8x35xf32>
    %c0_1 = arith.constant 0 : index
    %c0_2 = arith.constant 0 : index
    %1 = vector.load %arg1[%c0_1, %c0_2] : memref<35x35xf32, #tpu.memory_space<vmem>>, vector<35x35xf32>
    %cst = arith.constant dense<0.000000e+00> : vector<8x35xf32>
    %2 = tpu.matmul %0, %1, %cst {dimension_numbers = #tpu.dot_dimension_numbers<[1], [1], [0], [0], [0, 0, 1, 0], [], []>} : vector<8x35xf32>, vector<35x35xf32>, vector<8x35xf32> -> vector<8x35xf32>
    %c0_3 = arith.constant 0 : index
    %c0_4 = arith.constant 0 : index
    %3 = vector.load %arg2[%c0_3, %c0_4] : memref<1x35xf32, #tpu.memory_space<vmem>>, vector<1x35xf32>
    %4 = vector.broadcast %3 : vector<1x35xf32> to vector<8x35xf32>
    %5 = arith.addf %2, %4 : vector<8x35xf32>
    %c0_5 = arith.constant 0 : index
    %c0_6 = arith.constant 0 : index
    %6 = vector.load %arg3[%c0_5, %c0_6] : memref<8x35xf32, #tpu.memory_space<vmem>>, vector<8x35xf32>
    tpu.vector_store %arg3[%c0_5, %c0_6], %5 {strides = array<i32>} : memref<8x35xf32, #tpu.memory_space<vmem>>, vector<8x35xf32>,
    return
  }
}

</mosaic_0001>

<llo_original>
// kernel: tpu_custom_call.1
$region0: #{tpu_custom_call.1}
  #allocation0 [shape = 'u32[]', space=smem, size = 0x4, offset = 0x4, fixed_abs, tag = 'smem constant byte address 0x4 - core index']
  #allocation1 [shape = 'u32[144,128]{1,0:T(1,128)}', space=vmem, size = 0x12000, scoped, tag = 'internal scratch']
  %s0 = inlined_call_operand.hbm [shape: f32[8,35], index: 0, kind: input, shape index: {}]
  %s1 = inlined_call_operand.hbm [shape: f32[35,35], index: 1, kind: input, shape index: {}]
  %s2 = inlined_call_operand.vmem [shape: f32[1,35], index: 2, kind: input, shape index: {}]
  %s3 = inlined_call_operand.hbm [shape: f32[8,35], index: 3, kind: output, shape index: {}]
  %s4 = sld [smem:[#allocation0]]
  $region30: #{tpu_custom_call.1} parent=0
    _
  %s6 = ssub.s32 1, %s4
  %s7 = scalar_select 0, %s6, %s4
  $region1: #{tpu_custom_call.1} parent=0
    #allocation2 [shape = 'u8[4096]{0}', space=vmem, size = 0x1000, scoped, tag = 'input window, operand 0, single buffered']
    #allocation3 [shape = 's32[1]{0}', space=sflag, size = 0x4, scoped, tag = 'scoped memory for tpu_custom_call.1']
    #allocation4 [shape = 's32[1]{0}', space=sflag, size = 0x4, scoped, tag = 'scoped memory for tpu_custom_call.1']
    #allocation5 [shape = 'u8[20480]{0}', space=vmem, size = 0x5000, scoped, tag = 'input window, operand 1, single buffered']
    #allocation6 [shape = 's32[1]{0}', space=sflag, size = 0x4, scoped, tag = 'scoped memory for tpu_custom_call.1']
    #allocation7 [shape = 'u8[4096]{0}', space=vmem, size = 0x1000, scoped, tag = 'output window, operand 0, single buffered']
    %8 = vsyncpa [#allocation3], 0
    %9 = vsyncpa [#allocation6], 0
    %10 = vsyncpa [#allocation4], 0
    // Predicated region
    $region2: #{tpu_custom_call.1} parent=1 // pred_check
      _
    $region3: #{tpu_custom_call.1} parent=1 // pred_check_branch
      %12 = sbr.rel (0) target = $region5
    $region4: #{tpu_custom_call.1} parent=1 // pred_region
      %s14 = ssub.s32 128, 128
      %15 = vsyncadd [#allocation3], %s14
      %s17 = sshll.u32 [#allocation2], 4
      %s18 = int_to_ptr.vmem [resolvable:$true] %s17
      %20 = dma.hbm_to_vmem [thread:$0]  %s0, 128, %s18, [#allocation3]
    $region5: #{tpu_custom_call.1} parent=1 // pred_fallthru
      _
    // Predicated region
    $region6: #{tpu_custom_call.1} parent=1 // pred_check
      _
    $region7: #{tpu_custom_call.1} parent=1 // pred_check_branch
      %22 = sbr.rel (0) target = $region9
    $region8: #{tpu_custom_call.1} parent=1 // pred_region
      %s24 = ssub.s32 640, 640
      %25 = vsyncadd [#allocation6], %s24
      %s26 = sshll.u32 [#allocation5], 4
      %s27 = int_to_ptr.vmem [resolvable:$true] %s26
      %32 = dma.hbm_to_vmem [thread:$0]  %s1, 640, %s27, [#allocation6], 128, 128, 8
    $region9: #{tpu_custom_call.1} parent=1 // pred_fallthru
      _
    // Predicated region
    $region10: #{tpu_custom_call.1} parent=1 // pred_check
      _
    $region11: #{tpu_custom_call.1} parent=1 // pred_check_branch
      %34 = sbr.rel (0) target = $region13
    $region12: #{tpu_custom_call.1} parent=1 // pred_region
      _
    $region13: #{tpu_custom_call.1} parent=1 // pred_fallthru
      _
    // Predicated region
    $region14: #{tpu_custom_call.1} parent=1 // pred_check
      _
    $region15: #{tpu_custom_call.1} parent=1 // pred_check_branch
      %36 = sbr.rel (0) target = $region17
    $region16: #{tpu_custom_call.1} parent=1 // pred_region
      %37 = dma.done [#allocation3], 128
    $region17: #{tpu_custom_call.1} parent=1 // pred_fallthru
      _
    // Predicated region
    $region18: #{tpu_custom_call.1} parent=1 // pred_check
      _
    $region19: #{tpu_custom_call.1} parent=1 // pred_check_branch
      %39 = sbr.rel (0) target = $region21
    $region20: #{tpu_custom_call.1} parent=1 // pred_region
      %40 = dma.done [#allocation6], 640
    $region21: #{tpu_custom_call.1} parent=1 // pred_fallthru
      _
    %v41 = vld [vmem:[#allocation2] sm:$0xff]
    %v42 = vld [vmem:[#allocation5] sm:$0xff]
    %v43 = vld [vmem:[#allocation5 + $0x8] sm:$0xff]
    %v44 = vld [vmem:[#allocation5 + $0x10] sm:$0xff]
    %v45 = vld [vmem:[#allocation5 + $0x18] sm:$0xff]
    %v46 = vld [vmem:[#allocation5 + $0x20] sm:$0x7]
    %v47 = vld [vmem:[%s2] sm:$0x1]
    %v49 = vlaneseq
    %v50 = vshrl.u32 %v49, 7
    %v51 = vsub.s32 0, %v50
    %v52 = vrot.slane %v47, %v51
    %vm54 = vcmask 285696
    %v56 = vsel %vm54, %v41, 0
    %v59 = vsel %vm54, %v42, 0
    %v62 = vsel %vm54, %v43, 0
    %v65 = vsel %vm54, %v44, 0
    %v68 = vsel %vm54, %v45, 0
    %v71 = vsel %vm54, %v46, 0
    %73 = vmatprep.subr.mxu0 0.0
    %74 = vmatpush1.xpose.msra.mxu0 %v59
    %75 = vmatprep.subr.mxu0 0.0
    %76 = vmatpush1.xpose.msra.mxu0 %v62
    %77 = vmatprep.subr.mxu0 0.0
    %78 = vmatpush1.xpose.msra.mxu0 %v65
    %79 = vmatprep.subr.mxu0 0.0
    %80 = vmatpush1.xpose.msra.mxu0 %v68
    %81 = vmatprep.subr.mxu0 0.0
    %82 = vmatpush1.xpose.msra.mxu0 %v71
    %83 = vmatprep.subr.mxu0 0.0
    %84 = vmatpush1.xpose.msra.mxu0 0.0
    %85 = vmatprep.subr.mxu0 0.0
    %86 = vmatpush1.xpose.msra.mxu0 0.0
    %87 = vmatprep.subr.mxu0 0.0
    %88 = vmatpush1.xpose.msra.mxu0 0.0
    %89 = vmatprep.subr.mxu0 0.0
    %90 = vmatpush1.xpose.msra.mxu0 0.0
    %91 = vmatprep.subr.mxu0 0.0
    %92 = vmatpush1.xpose.msra.mxu0 0.0
    %93 = vmatprep.subr.mxu0 0.0
    %94 = vmatpush1.xpose.msra.mxu0 0.0
    %95 = vmatprep.subr.mxu0 0.0
    %96 = vmatpush1.xpose.msra.mxu0 0.0
    %97 = vmatprep.subr.mxu0 0.0
    %98 = vmatpush1.xpose.msra.mxu0 0.0
    %99 = vmatprep.subr.mxu0 0.0
    %100 = vmatpush1.xpose.msra.mxu0 0.0
    %101 = vmatprep.subr.mxu0 0.0
    %102 = vmatpush1.xpose.msra.mxu0 0.0
    %103 = vmatprep.subr.mxu0 0.0
    %104 = vmatpush1.xpose.msra.mxu0 0.0
    %105 = vmatprep.subr.mxu0 0.0
    %106 = vmatpush1.xpose.msra.mxu0 0.0
    %107 = vmatprep.subr.mxu0 0.0
    %108 = vmatpush1.xpose.msra.mxu0 0.0
    %109 = vmatprep.subr.mxu0 0.0
    %110 = vmatpush1.xpose.msra.mxu0 0.0
    %111 = vmatprep.subr.mxu0 0.0
    %112 = vmatpush1.xpose.msra.mxu0 0.0
    %113 = vmatprep.subr.mxu0 0.0
    %114 = vmatpush1.xpose.msra.mxu0 0.0
    %115 = vmatprep.subr.mxu0 0.0
    %116 = vmatpush1.xpose.msra.mxu0 0.0
    %117 = vmatprep.subr.mxu0 0.0
    %118 = vmatpush1.xpose.msra.mxu0 0.0
    %119 = vmatprep.subr.mxu0 0.0
    %120 = vmatpush1.xpose.msra.mxu0 0.0
    %121 = vmatprep.subr.mxu0 0.0
    %122 = vmatpush1.xpose.msra.mxu0 0.0
    %123 = vmatprep.subr.mxu0 0.0
    %124 = vmatpush1.xpose.msra.mxu0 0.0
    %125 = vmatprep.subr.mxu0 0.0
    %126 = vmatpush1.xpose.msra.mxu0 0.0
    %127 = vmatprep.subr.mxu0 0.0
    %128 = vmatpush1.xpose.msra.mxu0 0.0
    %129 = vmatprep.subr.mxu0 0.0
    %130 = vmatpush1.xpose.msra.mxu0 0.0
    %131 = vmatprep.subr.mxu0 0.0
    %132 = vmatpush1.xpose.msra.mxu0 0.0
    %133 = vmatprep.subr.mxu0 0.0
    %134 = vmatpush1.xpose.msra.mxu0 0.0
    %135 = vmatprep.subr.mxu0 0.0
    %136 = vmatpush1.xpose.msra.mxu0 0.0
    %137 = vmatprep.mubr.f32.mxu0 0.0
    %138 = vmatmul.mubr.f32.gmra.mrb[0].mxu0 %v56
    %v139 = vpop.f32.mrb[0].mxu0
    %v140 = vadd.f32 %v52, %v139
    %v141 = vpop.f32.mrb[0].mxu0
    %142 = vdwg.mxu0
    %143 = vst.msk [vmem:[#allocation7] sm:$0xff] %vm54, %v140
    // Predicated region
    $region22: #{tpu_custom_call.1} parent=1 // pred_check
      _
    $region23: #{tpu_custom_call.1} parent=1 // pred_check_branch
      %145 = sbr.rel (0) target = $region25
    $region24: #{tpu_custom_call.1} parent=1 // pred_region
      %s147 = ssub.s32 128, 128
      %148 = vsyncadd [#allocation4], %s147
      %s150 = sshll.u32 [#allocation7], 4
      %s151 = int_to_ptr.vmem [resolvable:$true] %s150
      %153 = dma.vmem_to_hbm [thread:$0]  %s151, 128, %s3, [#allocation4]
    $region25: #{tpu_custom_call.1} parent=1 // pred_fallthru
      _
    // Predicated region
    $region26: #{tpu_custom_call.1} parent=1 // pred_check
      _
    $region27: #{tpu_custom_call.1} parent=1 // pred_check_branch
      %155 = sbr.rel (0) target = $region29
    $region28: #{tpu_custom_call.1} parent=1 // pred_region
      %156 = dma.done [#allocation4], 128
    $region29: #{tpu_custom_call.1} parent=1 // pred_fallthru
      _
    %157 = vsyncpa [#allocation3], 1
    %158 = vsyncpa [#allocation6], 1
    %159 = vsyncpa [#allocation4], 1

</llo_original>
